<compile_context>
chip_gen: v7x
topology: tpu7x:2x2x1
jax: 0.10.0
libtpu: 0.0.40
codegen_flags: <defaults>
</compile_context>

<pallas_src>
import jax
import jax.numpy as jnp
from jax.experimental import pallas as pl
from jax.experimental.pallas import tpu as pltpu


def _make_identity_dma_kernel(starts, sizes):
    """Build a kernel that copies `nchunk` contiguous row-slabs HBM -> HBM."""
    nchunk = len(starts)

    def kernel(x_hbm, o_hbm, sems):
        copies = [
            pltpu.make_async_copy(
                x_hbm.at[pl.ds(starts[c], sizes[c]), :],
                o_hbm.at[pl.ds(starts[c], sizes[c]), :],
                sems.at[c],
            )
            for c in range(nchunk)
        ]
        # Issue all chunk DMAs back-to-back so several are in flight at once,
        # then drain.  The DMA engines stream HBM->HBM at full bandwidth; the
        # TensorCore only issues descriptors.
        for cp in copies:
            cp.start()
        for cp in copies:
            cp.wait()

    return kernel


@jax.jit
def segnet_forward(x):
    """Identity forward pass of SegNet as a Pallas TPU kernel.

    x: jnp.ndarray of shape [N, C, H, W] (any dtype). Returns an array with
    identical shape/dtype/values.
    """
    orig_shape = x.shape
    total = x.size

    # Lane-dense 2-D view: last dim a large multiple of 128 when the element
    # count allows it; otherwise fall back to the natural (N*C*H, W) slab.
    lane = None
    for cand in (1024, 512, 256, 128):
        if total % cand == 0:
            lane = cand
            break
    if lane is None:
        lane = orig_shape[-1]
    rows = total // lane
    x2d = x.reshape(rows, lane)

    # Chunk the slab into up to 8 contiguous row ranges -> up to 8 DMAs in
    # flight (covers v5e/v6e/v7x; purely DMA/HBM-bound, no VMEM budget needed).
    nchunk = max(1, min(8, rows))
    base = rows // nchunk
    rem = rows - base * nchunk
    sizes = [base + (1 if c < rem else 0) for c in range(nchunk)]
    starts = [sum(sizes[:c]) for c in range(nchunk)]

    out2d = pl.pallas_call(
        _make_identity_dma_kernel(starts, sizes),
        out_shape=jax.ShapeDtypeStruct((rows, lane), x.dtype),
        in_specs=[pl.BlockSpec(memory_space=pl.ANY)],
        out_specs=pl.BlockSpec(memory_space=pl.ANY),
        scratch_shapes=[pltpu.SemaphoreType.DMA((nchunk,))],
    )(x2d)

    return out2d.reshape(orig_shape)


if __name__ == "__main__":
    key = jax.random.PRNGKey(0)
    # Small NCHW input consistent with a segmentation-net forward signature.
    x = jax.random.normal(key, (2, 4, 16, 16), dtype=jnp.float32)

    y = segnet_forward(x)
    y = jax.block_until_ready(y)

    # Correctness check against the reference semantics (identity).
    assert y.shape == x.shape
    assert y.dtype == x.dtype
    assert bool(jnp.allclose(y, x))

    print("KERNEL_OK")
</pallas_src>

<mosaic_0001>
module attributes {stable_mosaic.version = 11 : i64} {
  func.func @kernel(%arg0: memref<2x1024xf32, #tpu.memory_space<any>>, %arg1: memref<2x1024xf32, #tpu.memory_space<any>>, %arg2: memref<2x!tpu.dma_semaphore, #tpu.memory_space<semaphore_mem>>) attributes {dimension_semantics = [], scalar_prefetch = 0 : i64, scratch_operands = 1 : i64, tpu.core_type = #tpu.core_type<tc>} {
    %c0_i32 = arith.constant 0 : i32
    %c0_i32_0 = arith.constant 0 : i32
    %c0_i32_1 = arith.constant 0 : i32
    %0 = tpu.memref_slice %arg0[%c0_i32_0, %c0_i32_1] : memref<2x1024xf32, #tpu.memory_space<any>> -> memref<1x1024xf32, #tpu.memory_space<any>>
    %c0_i32_2 = arith.constant 0 : i32
    %c0_i32_3 = arith.constant 0 : i32
    %1 = tpu.memref_slice %arg1[%c0_i32_2, %c0_i32_3] : memref<2x1024xf32, #tpu.memory_space<any>> -> memref<1x1024xf32, #tpu.memory_space<any>>
    %2 = tpu.memref_slice %arg2[%c0_i32] : memref<2x!tpu.dma_semaphore, #tpu.memory_space<semaphore_mem>> -> memref<1x!tpu.dma_semaphore, #tpu.memory_space<semaphore_mem>>
    %3 = tpu.memref_squeeze %2 : memref<1x!tpu.dma_semaphore, #tpu.memory_space<semaphore_mem>> -> memref<!tpu.dma_semaphore, #tpu.memory_space<semaphore_mem>>
    tpu.enqueue_dma source(%0 : memref<1x1024xf32, #tpu.memory_space<any>>) target(%1 : memref<1x1024xf32, #tpu.memory_space<any>>) target_semaphore(%3 : memref<!tpu.dma_semaphore, #tpu.memory_space<semaphore_mem>>)
    %c1_i32 = arith.constant 1 : i32
    %c1_i32_4 = arith.constant 1 : i32
    %c0_i32_5 = arith.constant 0 : i32
    %4 = tpu.memref_slice %arg0[%c1_i32_4, %c0_i32_5] : memref<2x1024xf32, #tpu.memory_space<any>> -> memref<1x1024xf32, #tpu.memory_space<any>>
    %c1_i32_6 = arith.constant 1 : i32
    %c0_i32_7 = arith.constant 0 : i32
    %5 = tpu.memref_slice %arg1[%c1_i32_6, %c0_i32_7] : memref<2x1024xf32, #tpu.memory_space<any>> -> memref<1x1024xf32, #tpu.memory_space<any>>
    %6 = tpu.memref_slice %arg2[%c1_i32] : memref<2x!tpu.dma_semaphore, #tpu.memory_space<semaphore_mem>> -> memref<1x!tpu.dma_semaphore, #tpu.memory_space<semaphore_mem>>
    %7 = tpu.memref_squeeze %6 : memref<1x!tpu.dma_semaphore, #tpu.memory_space<semaphore_mem>> -> memref<!tpu.dma_semaphore, #tpu.memory_space<semaphore_mem>>
    tpu.enqueue_dma source(%4 : memref<1x1024xf32, #tpu.memory_space<any>>) target(%5 : memref<1x1024xf32, #tpu.memory_space<any>>) target_semaphore(%7 : memref<!tpu.dma_semaphore, #tpu.memory_space<semaphore_mem>>)
    %c0_i32_8 = arith.constant 0 : i32
    %c0_i32_9 = arith.constant 0 : i32
    %c0_i32_10 = arith.constant 0 : i32
    %8 = tpu.memref_slice %arg0[%c0_i32_9, %c0_i32_10] : memref<2x1024xf32, #tpu.memory_space<any>> -> memref<1x1024xf32, #tpu.memory_space<any>>
    %c0_i32_11 = arith.constant 0 : i32
    %c0_i32_12 = arith.constant 0 : i32
    %9 = tpu.memref_slice %arg1[%c0_i32_11, %c0_i32_12] : memref<2x1024xf32, #tpu.memory_space<any>> -> memref<1x1024xf32, #tpu.memory_space<any>>
    %10 = tpu.memref_slice %arg2[%c0_i32_8] : memref<2x!tpu.dma_semaphore, #tpu.memory_space<semaphore_mem>> -> memref<1x!tpu.dma_semaphore, #tpu.memory_space<semaphore_mem>>
    %11 = tpu.memref_squeeze %10 : memref<1x!tpu.dma_semaphore, #tpu.memory_space<semaphore_mem>> -> memref<!tpu.dma_semaphore, #tpu.memory_space<semaphore_mem>>
    tpu.wait_dma2 semaphore(%11 : memref<!tpu.dma_semaphore, #tpu.memory_space<semaphore_mem>>) src(%8 : memref<1x1024xf32, #tpu.memory_space<any>>) dst(%9 : memref<1x1024xf32, #tpu.memory_space<any>>)
    %c1_i32_13 = arith.constant 1 : i32
    %c1_i32_14 = arith.constant 1 : i32
    %c0_i32_15 = arith.constant 0 : i32
    %12 = tpu.memref_slice %arg0[%c1_i32_14, %c0_i32_15] : memref<2x1024xf32, #tpu.memory_space<any>> -> memref<1x1024xf32, #tpu.memory_space<any>>
    %c1_i32_16 = arith.constant 1 : i32
    %c0_i32_17 = arith.constant 0 : i32
    %13 = tpu.memref_slice %arg1[%c1_i32_16, %c0_i32_17] : memref<2x1024xf32, #tpu.memory_space<any>> -> memref<1x1024xf32, #tpu.memory_space<any>>
    %14 = tpu.memref_slice %arg2[%c1_i32_13] : memref<2x!tpu.dma_semaphore, #tpu.memory_space<semaphore_mem>> -> memref<1x!tpu.dma_semaphore, #tpu.memory_space<semaphore_mem>>
    %15 = tpu.memref_squeeze %14 : memref<1x!tpu.dma_semaphore, #tpu.memory_space<semaphore_mem>> -> memref<!tpu.dma_semaphore, #tpu.memory_space<semaphore_mem>>
    tpu.wait_dma2 semaphore(%15 : memref<!tpu.dma_semaphore, #tpu.memory_space<semaphore_mem>>) src(%12 : memref<1x1024xf32, #tpu.memory_space<any>>) dst(%13 : memref<1x1024xf32, #tpu.memory_space<any>>)
    return
  }
}

</mosaic_0001>

<llo_original>
// kernel: segnet_forward.1
$region0: #{segnet_forward.1}
  #allocation0 [shape = 'u32[]', space=smem, size = 0x4, offset = 0x4, fixed_abs, tag = 'smem constant byte address 0x4 - core index']
  #allocation1 [shape = 'u32[144,128]{1,0:T(1,128)}', space=vmem, size = 0x12000, scoped, tag = 'internal scratch']
  #allocation2 [shape = 's32[2]{0}', space=sflag, size = 0x8, scoped, tag = 'scratch operand']
  #allocation3 [shape = 's32[]', space=sflag, size = 0x4, offset = 0, fixed_abs, tag = 'sflag constant byte address 0x0 - dummy sync flag']
  #allocation4 [shape = 's32[]', space=sflag, size = 0x4, offset = 0, fixed_abs, tag = 'sflag constant byte address 0x0 - dummy sync flag']
  %s0 = inlined_call_operand.vmem [shape: f32[2,1024], index: 0, kind: input, shape index: {}]
  %s1 = inlined_call_operand.vmem [shape: f32[2,1024], index: 1, kind: output, shape index: {}]
  %s2 = sld [smem:[#allocation0]]
  $region76: #{segnet_forward.1} parent=0
    _
  %s4 = ssub.s32 1, %s2
  %s5 = scalar_select 0, %s4, %s2
  %p7 = scmp.lt.u32.totalorder 1, 8
  %p8 = pneg %p7
  // Predicated region
  $region2: #{segnet_forward.1} parent=0 // pred_check
    _
  $region3: #{segnet_forward.1} parent=0 // pred_check_branch
    %10 = sbr.rel (%p7) target = $region5
  $region4: #{segnet_forward.1} parent=0 // pred_region
    %s39 = sand.u32 1, 7
    %p40 = scmp.eq.s32.totalorder %s39, 0
    %p41 = pneg %p40
    // Predicated region
    $region17: #{segnet_forward.1} parent=4 // pred_check
      _
    $region18: #{segnet_forward.1} parent=4 // pred_check_branch
      %43 = sbr.rel (%p40) target = $region20
    $region19: #{segnet_forward.1} parent=4 // pred_region
      %s44 = sand.u32 1, 7
      %s45 = ssub.s32 1, %s44
      %s46 = scalar_lea.vmem %s0, %s45
      %s47 = ssub.s32 1, %s44
      %s48 = scalar_lea.vmem %s1, %s47
      loop: start=0, step=1, limit=1
      $region21: #{segnet_forward.1} parent=19 // loop_pre_header
        _
      $region22: #{segnet_forward.1} parent=19 // loop_header
        %s50 = sphi 0, %s54
        %p51 = scmp.ge.s32.totalorder %s50, 1
        %s55 = sphi %s0, %s0
        %s56 = sphi %s1, %s1
      $region23: #{segnet_forward.1} parent=19 // loop_header_branch
        %53 = sbr.rel (%p51) target = $region27
      $region24: #{segnet_forward.1} parent=19 // loop_body
        _
      $region25: #{segnet_forward.1} parent=19 // loop_footer
        %s54 = sadd.s32 1, %s50
      $region26: #{segnet_forward.1} parent=19 // loop_footer_branch
        %49 = sbr.rel target = $region22
      $region27: #{segnet_forward.1} parent=19 // loop_exit
        _
      %s57 = sshllo.u32 0, %s44
      loop: start=0, step=1, limit=1
      $region28: #{segnet_forward.1} parent=19 // loop_pre_header
        _
      $region29: #{segnet_forward.1} parent=19 // loop_header
        %s59 = sphi 0, %s63
        %p60 = scmp.ge.s32.totalorder %s59, 1
        %s64 = sphi %s46, %s46
        %s65 = sphi %s48, %s48
      $region30: #{segnet_forward.1} parent=19 // loop_header_branch
        %62 = sbr.rel (%p60) target = $region34
      $region31: #{segnet_forward.1} parent=19 // loop_body
        %v66 = vld [vmem:[%s64] sm:%s57]
        %67 = vst [vmem:[%s65] sm:%s57] %v66
        %v68 = vld [vmem:[%s64 + $0x2] sm:%s57]
        %69 = vst [vmem:[%s65 + $0x2] sm:%s57] %v68
        %v70 = vld [vmem:[%s64 + $0x4] sm:%s57]
        %71 = vst [vmem:[%s65 + $0x4] sm:%s57] %v70
        %v72 = vld [vmem:[%s64 + $0x6] sm:%s57]
        %73 = vst [vmem:[%s65 + $0x6] sm:%s57] %v72
        %v74 = vld [vmem:[%s64 + $0x8] sm:%s57]
        %75 = vst [vmem:[%s65 + $0x8] sm:%s57] %v74
        %v76 = vld [vmem:[%s64 + $0xa] sm:%s57]
        %77 = vst [vmem:[%s65 + $0xa] sm:%s57] %v76
        %v78 = vld [vmem:[%s64 + $0xc] sm:%s57]
        %79 = vst [vmem:[%s65 + $0xc] sm:%s57] %v78
        %v80 = vld [vmem:[%s64 + $0xe] sm:%s57]
        %81 = vst [vmem:[%s65 + $0xe] sm:%s57] %v80
      $region32: #{segnet_forward.1} parent=19 // loop_footer
        %s63 = sadd.s32 1, %s59
      $region33: #{segnet_forward.1} parent=19 // loop_footer_branch
        %58 = sbr.rel target = $region29
      $region34: #{segnet_forward.1} parent=19 // loop_exit
        _
    $region20: #{segnet_forward.1} parent=4 // pred_fallthru
      _
  $region5: #{segnet_forward.1} parent=0 // pred_fallthru
    _
  // Predicated region
  $region6: #{segnet_forward.1} parent=0 // pred_check
    %p11 = pneg %p7
  $region7: #{segnet_forward.1} parent=0 // pred_check_branch
    %13 = sbr.rel (%p11) target = $region9
  $region8: #{segnet_forward.1} parent=0 // pred_region
    %s14 = sshllo.u32 0, 1
    loop: start=0, step=1, limit=1
    $region10: #{segnet_forward.1} parent=8 // loop_pre_header
      _
    $region11: #{segnet_forward.1} parent=8 // loop_header
      %s16 = sphi 0, %s20
      %p17 = scmp.ge.s32.totalorder %s16, 1
      %s21 = sphi %s0, %s0
      %s22 = sphi %s1, %s1
    $region12: #{segnet_forward.1} parent=8 // loop_header_branch
      %19 = sbr.rel (%p17) target = $region16
    $region13: #{segnet_forward.1} parent=8 // loop_body
      %v23 = vld [vmem:[%s21] sm:%s14]
      %24 = vst [vmem:[%s22] sm:%s14] %v23
      %v25 = vld [vmem:[%s21 + $0x2] sm:%s14]
      %26 = vst [vmem:[%s22 + $0x2] sm:%s14] %v25
      %v27 = vld [vmem:[%s21 + $0x4] sm:%s14]
      %28 = vst [vmem:[%s22 + $0x4] sm:%s14] %v27
      %v29 = vld [vmem:[%s21 + $0x6] sm:%s14]
      %30 = vst [vmem:[%s22 + $0x6] sm:%s14] %v29
      %v31 = vld [vmem:[%s21 + $0x8] sm:%s14]
      %32 = vst [vmem:[%s22 + $0x8] sm:%s14] %v31
      %v33 = vld [vmem:[%s21 + $0xa] sm:%s14]
      %34 = vst [vmem:[%s22 + $0xa] sm:%s14] %v33
      %v35 = vld [vmem:[%s21 + $0xc] sm:%s14]
      %36 = vst [vmem:[%s22 + $0xc] sm:%s14] %v35
      %v37 = vld [vmem:[%s21 + $0xe] sm:%s14]
      %38 = vst [vmem:[%s22 + $0xe] sm:%s14] %v37
    $region14: #{segnet_forward.1} parent=8 // loop_footer
      %s20 = sadd.s32 1, %s16
    $region15: #{segnet_forward.1} parent=8 // loop_footer_branch
      %15 = sbr.rel target = $region11
    $region16: #{segnet_forward.1} parent=8 // loop_exit
      _
  $region9: #{segnet_forward.1} parent=0 // pred_fallthru
    _
  // Predicated region
  $region35: #{segnet_forward.1} parent=0 // pred_check
    _
  $region36: #{segnet_forward.1} parent=0 // pred_check_branch
    %84 = sbr.rel (0) target = $region38
  $region37: #{segnet_forward.1} parent=0 // pred_region
    %85 = vsyncadd [#allocation2], 128
  $region38: #{segnet_forward.1} parent=0 // pred_fallthru
    _
  %s86 = scalar_lea.vmem %s0, 1
  %s87 = scalar_lea.vmem %s1, 1
  %s88 = scalar_lea.sflag [#allocation2], 1
  %p90 = scmp.lt.u32.totalorder 1, 8
  %p91 = pneg %p90
  // Predicated region
  $region39: #{segnet_forward.1} parent=0 // pred_check
    _
  $region40: #{segnet_forward.1} parent=0 // pred_check_branch
    %93 = sbr.rel (%p90) target = $region42
  $region41: #{segnet_forward.1} parent=0 // pred_region
    %s122 = sand.u32 1, 7
    %p123 = scmp.eq.s32.totalorder %s122, 0
    %p124 = pneg %p123
    // Predicated region
    $region54: #{segnet_forward.1} parent=41 // pred_check
      _
    $region55: #{segnet_forward.1} parent=41 // pred_check_branch
      %126 = sbr.rel (%p123) target = $region57
    $region56: #{segnet_forward.1} parent=41 // pred_region
      %s127 = sand.u32 1, 7
      %s128 = ssub.s32 1, %s127
      %s129 = scalar_lea.vmem %s86, %s128
      %s130 = ssub.s32 1, %s127
      %s131 = scalar_lea.vmem %s87, %s130
      loop: start=0, step=1, limit=1
      $region58: #{segnet_forward.1} parent=56 // loop_pre_header
        _
      $region59: #{segnet_forward.1} parent=56 // loop_header
        %s133 = sphi 0, %s137
        %p134 = scmp.ge.s32.totalorder %s133, 1
        %s138 = sphi %s86, %s86
        %s139 = sphi %s87, %s87
      $region60: #{segnet_forward.1} parent=56 // loop_header_branch
        %136 = sbr.rel (%p134) target = $region64
      $region61: #{segnet_forward.1} parent=56 // loop_body
        _
      $region62: #{segnet_forward.1} parent=56 // loop_footer
        %s137 = sadd.s32 1, %s133
      $region63: #{segnet_forward.1} parent=56 // loop_footer_branch
        %132 = sbr.rel target = $region59
      $region64: #{segnet_forward.1} parent=56 // loop_exit
        _
      %s140 = sshllo.u32 0, %s127
      loop: start=0, step=1, limit=1
      $region65: #{segnet_forward.1} parent=56 // loop_pre_header
        _
      $region66: #{segnet_forward.1} parent=56 // loop_header
        %s142 = sphi 0, %s146
        %p143 = scmp.ge.s32.totalorder %s142, 1
        %s147 = sphi %s129, %s129
        %s148 = sphi %s131, %s131
      $region67: #{segnet_forward.1} parent=56 // loop_header_branch
        %145 = sbr.rel (%p143) target = $region71
      $region68: #{segnet_forward.1} parent=56 // loop_body
        %v149 = vld [vmem:[%s147] sm:%s140]
        %150 = vst [vmem:[%s148] sm:%s140] %v149
        %v151 = vld [vmem:[%s147 + $0x2] sm:%s140]
        %152 = vst [vmem:[%s148 + $0x2] sm:%s140] %v151
        %v153 = vld [vmem:[%s147 + $0x4] sm:%s140]
        %154 = vst [vmem:[%s148 + $0x4] sm:%s140] %v153
        %v155 = vld [vmem:[%s147 + $0x6] sm:%s140]
        %156 = vst [vmem:[%s148 + $0x6] sm:%s140] %v155
        %v157 = vld [vmem:[%s147 + $0x8] sm:%s140]
        %158 = vst [vmem:[%s148 + $0x8] sm:%s140] %v157
        %v159 = vld [vmem:[%s147 + $0xa] sm:%s140]
        %160 = vst [vmem:[%s148 + $0xa] sm:%s140] %v159
        %v161 = vld [vmem:[%s147 + $0xc] sm:%s140]
        %162 = vst [vmem:[%s148 + $0xc] sm:%s140] %v161
        %v163 = vld [vmem:[%s147 + $0xe] sm:%s140]
        %164 = vst [vmem:[%s148 + $0xe] sm:%s140] %v163
      $region69: #{segnet_forward.1} parent=56 // loop_footer
        %s146 = sadd.s32 1, %s142
      $region70: #{segnet_forward.1} parent=56 // loop_footer_branch
        %141 = sbr.rel target = $region66
      $region71: #{segnet_forward.1} parent=56 // loop_exit
        _
    $region57: #{segnet_forward.1} parent=41 // pred_fallthru
      _
  $region42: #{segnet_forward.1} parent=0 // pred_fallthru
    _
  // Predicated region
  $region43: #{segnet_forward.1} parent=0 // pred_check
    %p94 = pneg %p90
  $region44: #{segnet_forward.1} parent=0 // pred_check_branch
    %96 = sbr.rel (%p94) target = $region46
  $region45: #{segnet_forward.1} parent=0 // pred_region
    %s97 = sshllo.u32 0, 1
    loop: start=0, step=1, limit=1
    $region47: #{segnet_forward.1} parent=45 // loop_pre_header
      _
    $region48: #{segnet_forward.1} parent=45 // loop_header
      %s99 = sphi 0, %s103
      %p100 = scmp.ge.s32.totalorder %s99, 1
      %s104 = sphi %s86, %s86
      %s105 = sphi %s87, %s87
    $region49: #{segnet_forward.1} parent=45 // loop_header_branch
      %102 = sbr.rel (%p100) target = $region53
    $region50: #{segnet_forward.1} parent=45 // loop_body
      %v106 = vld [vmem:[%s104] sm:%s97]
      %107 = vst [vmem:[%s105] sm:%s97] %v106
      %v108 = vld [vmem:[%s104 + $0x2] sm:%s97]
      %109 = vst [vmem:[%s105 + $0x2] sm:%s97] %v108
      %v110 = vld [vmem:[%s104 + $0x4] sm:%s97]
      %111 = vst [vmem:[%s105 + $0x4] sm:%s97] %v110
      %v112 = vld [vmem:[%s104 + $0x6] sm:%s97]
      %113 = vst [vmem:[%s105 + $0x6] sm:%s97] %v112
      %v114 = vld [vmem:[%s104 + $0x8] sm:%s97]
      %115 = vst [vmem:[%s105 + $0x8] sm:%s97] %v114
      %v116 = vld [vmem:[%s104 + $0xa] sm:%s97]
      %117 = vst [vmem:[%s105 + $0xa] sm:%s97] %v116
      %v118 = vld [vmem:[%s104 + $0xc] sm:%s97]
      %119 = vst [vmem:[%s105 + $0xc] sm:%s97] %v118
      %v120 = vld [vmem:[%s104 + $0xe] sm:%s97]
      %121 = vst [vmem:[%s105 + $0xe] sm:%s97] %v120
    $region51: #{segnet_forward.1} parent=45 // loop_footer
      %s103 = sadd.s32 1, %s99
    $region52: #{segnet_forward.1} parent=45 // loop_footer_branch
      %98 = sbr.rel target = $region48
    $region53: #{segnet_forward.1} parent=45 // loop_exit
      _
  $region46: #{segnet_forward.1} parent=0 // pred_fallthru
    _
  // Predicated region
  $region72: #{segnet_forward.1} parent=0 // pred_check
    _
  $region73: #{segnet_forward.1} parent=0 // pred_check_branch
    %167 = sbr.rel (0) target = $region75
  $region74: #{segnet_forward.1} parent=0 // pred_region
    %168 = vsyncadd %s88, 128
  $region75: #{segnet_forward.1} parent=0 // pred_fallthru
    _
  %s169 = smul.u32 1, 8
  %s170 = sshll.u32 %s169, 4
  %171 = dma.done [#allocation2], %s170
  %s172 = sshll.u32 %s169, 4
  %173 = dma.done %s88, %s172
  %174 = vsyncmov [#allocation2]
  %s175 = vpop.sfrf %174
  %p176 = scmp.eq.s32.totalorder %s175, 0
  %p177 = pneg %p176
  %179 = shalt.err (%p177)
  %s180 = scalar_lea.sflag [#allocation2], 1
  %181 = vsyncmov %s180
  %s182 = vpop.sfrf %181
  %p183 = scmp.eq.s32.totalorder %s182, 0
  %p184 = pneg %p183
  %186 = shalt.err (%p184)

</llo_original>
